<compile_context>
chip_gen: v6e
topology: v6e:2x2x1
jax: 0.10.0
libtpu: 0.0.40
codegen_flags: <defaults>
</compile_context>

<pallas_src>
import functools
import math

import jax
import jax.numpy as jnp
from jax import lax
from jax.experimental import pallas as pl
from jax.experimental.pallas import tpu as pltpu


# ----------------------------------------------------------------------------
# wrapper-side helpers (cheap JAX, outside the kernels)
# ----------------------------------------------------------------------------
def get_sine_pos_embed(pos, num_pos_feats, temperature=10000.0, exchange_xy=False):
    """pos: (..., K) in [0,1] -> (..., K * num_pos_feats) interleaved sin/cos."""
    scale = 2.0 * math.pi
    dim_t = jnp.arange(num_pos_feats, dtype=jnp.float32)
    dim_t = temperature ** (2.0 * jnp.floor(dim_t / 2.0) / num_pos_feats)

    def sine(x):                                        # x: (..., 1)
        sx = x * scale / dim_t                          # (..., num_pos_feats)
        inter = jnp.stack([jnp.sin(sx[..., 0::2]), jnp.cos(sx[..., 1::2])], axis=-1)
        return inter.reshape(sx.shape[:-1] + (num_pos_feats,))

    parts = [sine(pos[..., i:i + 1]) for i in range(pos.shape[-1])]
    if exchange_xy and len(parts) >= 2:
        parts[0], parts[1] = parts[1], parts[0]
    return jnp.concatenate(parts, axis=-1)


def inverse_sigmoid(x, eps=1e-5):
    x = jnp.clip(x, 0.0, 1.0)
    return jnp.log(jnp.clip(x, eps, None) / jnp.clip(1.0 - x, eps, None))


def get_memory_pos(spatial_shapes):
    """Normalized (x, y) coordinates of every flattened feature point: (L, 2)."""
    pos_list = []
    for hw in list(spatial_shapes):
        h, w = int(hw[0]), int(hw[1])
        gy, gx = jnp.meshgrid(jnp.arange(h, dtype=jnp.float32),
                              jnp.arange(w, dtype=jnp.float32), indexing="ij")
        gx = (gx + 0.5) / w
        gy = (gy + 0.5) / h
        pos_list.append(jnp.stack([gx.reshape(-1), gy.reshape(-1)], axis=-1))
    return jnp.concatenate(pos_list, axis=0)


def _layer_norm(x, gamma, beta, eps=1e-5):
    mu = jnp.mean(x, axis=-1, keepdims=True)
    var = jnp.mean((x - mu) * (x - mu), axis=-1, keepdims=True)
    return (x - mu) * lax.rsqrt(var + eps) * gamma + beta


def _pick_row_tile(rows):
    for t in (512, 256, 128, 64, 32, 16, 8):
        if rows % t == 0:
            return t
    return rows


# ----------------------------------------------------------------------------
# Pallas kernel 1: ref_point_head = Linear(2C, C) + LayerNorm  (computed once)
# ----------------------------------------------------------------------------
def _ref_point_head_kernel(x_ref, w_ref, b_ref, g_ref, beta_ref, o_ref):
    y = jnp.dot(x_ref[...], w_ref[...], preferred_element_type=jnp.float32) + b_ref[...]
    o_ref[...] = _layer_norm(y, g_ref[...], beta_ref[...]).astype(o_ref.dtype)


@functools.partial(jax.jit, static_argnames=("row_tile",))
def _run_ref_point_head(x, w, b, g, beta, *, row_tile):
    rows, twoc = x.shape
    c = w.shape[1]
    return pl.pallas_call(
        _ref_point_head_kernel,
        out_shape=jax.ShapeDtypeStruct((rows, c), jnp.float32),
        grid_spec=pltpu.PrefetchScalarGridSpec(
            num_scalar_prefetch=0,
            grid=(rows // row_tile,),
            in_specs=[pl.BlockSpec((row_tile, twoc), lambda i: (i, 0)),
                      pl.BlockSpec((twoc, c), lambda i: (0, 0)),
                      pl.BlockSpec((1, c), lambda i: (0, 0)),
                      pl.BlockSpec((1, c), lambda i: (0, 0)),
                      pl.BlockSpec((1, c), lambda i: (0, 0))],
            out_specs=pl.BlockSpec((row_tile, c), lambda i: (i, 0))),
        compiler_params=pltpu.CompilerParams(
            dimension_semantics=("parallel",)),
    )(x, w, b, g, beta)


# ----------------------------------------------------------------------------
# Pallas kernel 2: one fused decoder layer + class head + bbox head.
# Grid = (batch [parallel], memory-chunk [arbitrary]); for small memories the
# kv axis has a single step, so the online-softmax path reduces to exact
# softmax with no extra HBM traffic.
# ----------------------------------------------------------------------------
def _decoder_layer_kernel(q_ref, qpos_ref, reflog_ref, mem_ref, kpos_ref, kpm_ref,
                          *rest, q_len, chunk):
    (w_ug, b_ug, a_dec, w_so, b_so, ln1g, ln1b,
     w_q, b_q, w_kv, b_kv, w_co, b_co, ln2g, ln2b,
     w_f1, b_f1, w_f2, b_f2, ln3g, ln3b,
     w_b1cls, b_b1, b_cls, w_b2, b_b2, w_b3, b_b3,
     qout_ref, cls_ref, coord_ref,
     u_scr, sg_scr, x1_scr, qc_scr, acc_scr, m_scr, l_scr) = rest

    ki = pl.program_id(1)
    nk = pl.num_programs(1)
    c_dim = qc_scr.shape[-1]

    # ---------------- prologue (per batch): SSM self mixer on the queries ----
    @pl.when(ki == 0)
    def _prologue():
        q = q_ref[0].astype(jnp.float32)                 # (Qp, C)
        qpos = qpos_ref[0].astype(jnp.float32)
        h = (q + qpos).astype(jnp.bfloat16)
        # fused input/gate projection: one (C, 2C) matmul
        ug = jnp.dot(h, w_ug[...], preferred_element_type=jnp.float32) + b_ug[...]
        g = ug[:, c_dim:]
        sg_scr[...] = g * jax.nn.sigmoid(g)              # silu(gate) staged in VMEM
        a = a_dec[...]                                   # (1, C) per-channel decay
        u_scr[...] = (1.0 - a) * ug[:, :c_dim]           # x_t = (1 - a) * u_t

        # hoisted decay powers for the log-depth in-chunk scan (trace-time unroll)
        stage_decays = []
        d, sh = a, 1
        while sh < chunk:
            stage_decays.append((sh, d))
            d, sh = d * d, sh * 2
        pow_rows, p = [], a
        for _ in range(chunk):
            pow_rows.append(p)
            p = p * a
        a_pow = jnp.concatenate(pow_rows, axis=0)        # (chunk, C): a^1 .. a^chunk
        row_idx = lax.broadcasted_iota(jnp.int32, (chunk, c_dim), 0)

        # causal scan s_t = a*s_{t-1} + (1-a)*u_t : Hillis-Steele prefix scan on a
        # whole (8, C) vreg per chunk (3 XLU rolls instead of 8 dependent VPU
        # steps), carry = chunk-final state, one aligned (8, C) store per chunk.
        def chunk_body(ci, carry):
            base = pl.multiple_of(ci * chunk, chunk)
            x = u_scr[pl.ds(base, chunk), :]             # (chunk, C)
            for s_h, dec in stage_decays:
                rolled = pltpu.roll(x, shift=s_h, axis=0)
                x = x + dec * jnp.where(row_idx >= s_h, rolled, 0.0)
            s_blk = x + a_pow * carry                    # inject a^{t+1} * carry
            u_scr[pl.ds(base, chunk), :] = s_blk * sg_scr[pl.ds(base, chunk), :]
            return s_blk[chunk - 1:chunk, :]             # state after this chunk

        lax.fori_loop(0, q_len // chunk, chunk_body,
                      jnp.zeros((1, c_dim), jnp.float32), unroll=True)

        mix = jnp.dot(u_scr[...].astype(jnp.bfloat16), w_so[...],
                      preferred_element_type=jnp.float32) + b_so[...]
        x1 = _layer_norm(q + mix, ln1g[...], ln1b[...])
        x1_scr[...] = x1
        qc_scr[...] = jnp.dot((x1 + qpos).astype(jnp.bfloat16), w_q[...],
                              preferred_element_type=jnp.float32) + b_q[...]

        m_scr[...] = jnp.full(m_scr.shape, -jnp.inf, jnp.float32)
        l_scr[...] = jnp.zeros(l_scr.shape, jnp.float32)
        acc_scr[...] = jnp.zeros(acc_scr.shape, jnp.float32)

    # ---------------- cross-attention over this memory chunk -----------------
    mem = mem_ref[0]                                     # (TK, C) bf16
    # fused K|V projection; K's pos-embed term is the precomputed kpos bias.
    kv = jnp.dot(mem, w_kv[...], preferred_element_type=jnp.float32) + b_kv[...]
    k = kv[:, :c_dim] + kpos_ref[...]                    # (TK, C) f32
    v = kv[:, c_dim:]

    # TODO(synk): single-head stand-in; num_heads accepted but not split.
    scale = 1.0 / math.sqrt(c_dim)
    s = lax.dot_general(qc_scr[...].astype(jnp.bfloat16), k.astype(jnp.bfloat16),
                        dimension_numbers=(((1,), (1,)), ((), ())),
                        preferred_element_type=jnp.float32) * scale
    s = s + kpm_ref[0]                                   # (1, TK) additive mask bias

    m_prev = m_scr[...]                                  # (Qp, 1)
    m_new = jnp.maximum(m_prev, jnp.max(s, axis=-1, keepdims=True))
    alpha = jnp.exp(m_prev - m_new)
    p = jnp.exp(s - m_new)
    l_scr[...] = alpha * l_scr[...] + jnp.sum(p, axis=-1, keepdims=True)
    acc_scr[...] = alpha * acc_scr[...] + jnp.dot(
        p.astype(jnp.bfloat16), v.astype(jnp.bfloat16),
        preferred_element_type=jnp.float32)
    m_scr[...] = m_new

    # ---------------- epilogue: out-proj + FFN + fused heads ------------------
    @pl.when(ki == nk - 1)
    def _epilogue():
        ctx = acc_scr[...] / l_scr[...]                  # exact normalization
        cross = jnp.dot(ctx.astype(jnp.bfloat16), w_co[...],
                        preferred_element_type=jnp.float32) + b_co[...]
        x2 = _layer_norm(x1_scr[...] + cross, ln2g[...], ln2b[...])

        f = jnp.dot(x2.astype(jnp.bfloat16), w_f1[...],
                    preferred_element_type=jnp.float32) + b_f1[...]
        f = jnp.maximum(f, 0.0)
        f = jnp.dot(f.astype(jnp.bfloat16), w_f2[...],
                    preferred_element_type=jnp.float32) + b_f2[...]
        x3 = _layer_norm(x2 + f, ln3g[...], ln3b[...])
        qout_ref[0] = x3.astype(qout_ref.dtype)

        # fused class head + first bbox-MLP layer: x3 @ [w_b1 | w_cls]
        x3b = x3.astype(jnp.bfloat16)
        hc = jnp.dot(x3b, w_b1cls[...], preferred_element_type=jnp.float32)
        cls_ref[0] = (hc[:, c_dim:] + b_cls[...]).astype(cls_ref.dtype)

        hb = jnp.maximum(hc[:, :c_dim] + b_b1[...], 0.0)
        hb = jnp.maximum(jnp.dot(hb.astype(jnp.bfloat16), w_b2[...],
                                 preferred_element_type=jnp.float32) + b_b2[...], 0.0)
        delta = jnp.dot(hb.astype(jnp.bfloat16), w_b3[...],
                        preferred_element_type=jnp.float32) + b_b3[...]
        coord_ref[0] = jax.nn.sigmoid(delta + reflog_ref[0]).astype(coord_ref.dtype)


def _full_spec(arr):
    nd = arr.ndim
    return pl.BlockSpec(arr.shape, lambda *_: (0,) * nd)


@functools.partial(jax.jit, static_argnames=("kv_tile", "chunk"))
def _run_layer(q, qpos, reflog, memory, kpos_bias, kpm_bias, params,
               *, kv_tile, chunk):
    B, Qp, C = q.shape
    Lp = memory.shape[1]
    nk = Lp // kv_tile
    NC = params[23].shape[1]            # b_cls

    kernel = functools.partial(_decoder_layer_kernel, q_len=Qp, chunk=chunk)

    in_specs = [
        pl.BlockSpec((1, Qp, C), lambda b, k: (b, 0, 0)),        # query (bf16)
        pl.BlockSpec((1, Qp, C), lambda b, k: (b, 0, 0)),        # query pos (bf16)
        pl.BlockSpec((1, Qp, 4), lambda b, k: (b, 0, 0)),        # inverse-sigmoid refs
        pl.BlockSpec((1, kv_tile, C), lambda b, k: (b, k, 0)),   # memory chunk (bf16)
        pl.BlockSpec((kv_tile, C), lambda b, k: (k, 0)),         # mpos @ w_k bias (bf16)
        pl.BlockSpec((1, 1, kv_tile), lambda b, k: (b, 0, k)),   # key-padding bias
    ] + [_full_spec(p) for p in params]

    out_specs = [
        pl.BlockSpec((1, Qp, C), lambda b, k: (b, 0, 0)),
        pl.BlockSpec((1, Qp, NC), lambda b, k: (b, 0, 0)),
        pl.BlockSpec((1, Qp, 4), lambda b, k: (b, 0, 0)),
    ]
    out_shape = (jax.ShapeDtypeStruct((B, Qp, C), jnp.bfloat16),
                 jax.ShapeDtypeStruct((B, Qp, NC), jnp.float32),
                 jax.ShapeDtypeStruct((B, Qp, 4), jnp.float32))

    scratch_shapes = [
        pltpu.VMEM((Qp, C), jnp.float32),   # (1-a)*u -> gated scan output (reused)
        pltpu.VMEM((Qp, C), jnp.float32),   # silu(gate)
        pltpu.VMEM((Qp, C), jnp.float32),   # x1 (post LN1)
        pltpu.VMEM((Qp, C), jnp.float32),   # attention query projection
        pltpu.VMEM((Qp, C), jnp.float32),   # softmax accumulator
        pltpu.VMEM((Qp, 1), jnp.float32),   # running max
        pltpu.VMEM((Qp, 1), jnp.float32),   # running denom
    ]

    return pl.pallas_call(
        kernel,
        out_shape=out_shape,
        grid_spec=pltpu.PrefetchScalarGridSpec(
            num_scalar_prefetch=0,
            grid=(B, nk),
            in_specs=in_specs,
            out_specs=out_specs,
            scratch_shapes=scratch_shapes),
        compiler_params=pltpu.CompilerParams(
            dimension_semantics=("parallel", "arbitrary"),
            vmem_limit_bytes=32 * 1024 * 1024),
    )(q, qpos, reflog, memory, kpos_bias, kpm_bias, *params)


# ----------------------------------------------------------------------------
# parameter construction
# ----------------------------------------------------------------------------
def _init_layer_params(key, c, ffn, num_classes):
    ks = jax.random.split(key, 11)

    def lin(k, i, o):
        return (jax.random.normal(k, (i, o), jnp.float32) / math.sqrt(i)).astype(jnp.bfloat16)

    w_ug = lin(ks[0], c, 2 * c); b_ug = jnp.zeros((1, 2 * c), jnp.float32)
    a_dec = jnp.linspace(0.55, 0.95, c, dtype=jnp.float32).reshape(1, c)
    w_so = lin(ks[1], c, c); b_so = jnp.zeros((1, c), jnp.float32)
    ln1_g = jnp.ones((1, c), jnp.float32); ln1_b = jnp.zeros((1, c), jnp.float32)
    w_q = lin(ks[2], c, c); b_q = jnp.zeros((1, c), jnp.float32)
    w_kv = jnp.concatenate([lin(ks[3], c, c), lin(ks[4], c, c)], axis=1)  # [w_k|w_v]
    b_kv = jnp.zeros((1, 2 * c), jnp.float32)
    w_co = lin(ks[5], c, c); b_co = jnp.zeros((1, c), jnp.float32)
    ln2_g = jnp.ones((1, c), jnp.float32); ln2_b = jnp.zeros((1, c), jnp.float32)
    w_f1 = lin(ks[6], c, ffn); b_f1 = jnp.zeros((1, ffn), jnp.float32)
    w_f2 = lin(ks[7], ffn, c); b_f2 = jnp.zeros((1, c), jnp.float32)
    ln3_g = jnp.ones((1, c), jnp.float32); ln3_b = jnp.zeros((1, c), jnp.float32)
    # class head bias -log((1-p)/p), p = 0.01; bbox MLP last layer zero-initialized
    # (matches init_weights)
    w_cls = lin(ks[8], c, num_classes)
    b_cls = jnp.full((1, num_classes), -math.log((1.0 - 0.01) / 0.01), jnp.float32)
    w_b1 = lin(ks[9], c, c); b_b1 = jnp.zeros((1, c), jnp.float32)
    w_b1cls = jnp.concatenate([w_b1, w_cls], axis=1)                       # [w_b1|w_cls]
    w_b2 = lin(ks[10], c, c); b_b2 = jnp.zeros((1, c), jnp.float32)
    w_b3 = jnp.zeros((c, 4), jnp.bfloat16); b_b3 = jnp.zeros((1, 4), jnp.float32)
    return (w_ug, b_ug, a_dec, w_so, b_so, ln1_g, ln1_b,
            w_q, b_q, w_kv, b_kv, w_co, b_co, ln2_g, ln2_b,
            w_f1, b_f1, w_f2, b_f2, ln3_g, ln3_b,
            w_b1cls, b_b1, b_cls, w_b2, b_b2, w_b3, b_b3)


def _init_ref_point_head(key, c):
    bound = math.sqrt(6.0 / (2 * c + c))          # xavier_uniform (matches init_weights)
    w = jax.random.uniform(key, (2 * c, c), jnp.float32, -bound, bound).astype(jnp.bfloat16)
    return (w, jnp.zeros((1, c), jnp.float32),
            jnp.ones((1, c), jnp.float32), jnp.zeros((1, c), jnp.float32))


# ----------------------------------------------------------------------------
# decoder wrapper (mirrors SsmTransformerDecoder.forward)
# ----------------------------------------------------------------------------
class SsmTransformerDecoderPallas:
    CHUNK = 8          # SSM scan chunk == sublane count -> whole-vreg scan steps
    MAX_KV_TILE = 512  # collapse the kv axis when padded L fits a single tile

    def __init__(self, embed_dim, ffn_dim, num_heads, num_layers, num_classes,
                 serialization_strategies=None, key=None):
        if key is None:
            key = jax.random.PRNGKey(0)
        self.embed_dim = embed_dim
        self.num_heads = num_heads          # TODO(synk): representative layer is single-head
        self.num_layers = num_layers
        self.num_classes = num_classes
        self.serialization_strategies = (serialization_strategies
                                         or ["default"] * num_layers)
        self.ref_point_head = _init_ref_point_head(jax.random.fold_in(key, 1000),
                                                   embed_dim)
        self.layer_params = [
            _init_layer_params(jax.random.fold_in(key, i), embed_dim, ffn_dim,
                               num_classes)
            for i in range(num_layers)
        ]

    def __call__(self, query, reference_points, value, spatial_shapes,
                 level_start_index, valid_ratios, key_padding_mask=None):
        B, Q, C = query.shape
        assert C == self.embed_dim
        L = value.shape[1]
        chunk = self.CHUNK

        Qp = pl.cdiv(Q, chunk) * chunk
        L128 = pl.cdiv(L, 128) * 128
        if L128 <= self.MAX_KV_TILE:
            kv_tile, Lp = L128, L128            # kv axis collapses to 1 step / batch
        else:
            kv_tile = self.MAX_KV_TILE
            Lp = pl.cdiv(L, kv_tile) * kv_tile

        q = jnp.pad(query.astype(jnp.float32), ((0, 0), (0, Qp - Q), (0, 0)))
        refs = jnp.pad(reference_points.astype(jnp.float32),
                       ((0, 0), (0, Qp - Q), (0, 0)), constant_values=0.5)
        mem = jnp.pad(value.astype(jnp.float32), ((0, 0), (0, Lp - L), (0, 0)))
        mem_bf16 = mem.astype(jnp.bfloat16)     # re-streamed every layer -> bf16
        if key_padding_mask is None:
            mask = jnp.zeros((B, L), jnp.float32)
        else:
            mask = key_padding_mask.astype(jnp.float32)
        mask = jnp.pad(mask, ((0, 0), (0, Lp - L)), constant_values=1.0)
        kpm_bias = (mask * -1e9)[:, None, :]                  # (B, 1, Lp)

        # query positional embedding: sine(reference_points) -> Linear + LN (Pallas);
        # computed ONCE from the initial reference points (ref_point_head is outside
        # the layer loop in the reference module).
        sine = get_sine_pos_embed(refs, C // 2, exchange_xy=False)   # (B, Qp, 2C)
        w, b, g, beta = self.ref_point_head
        rows = B * Qp
        qpos = _run_ref_point_head(sine.reshape(rows, 2 * C).astype(jnp.bfloat16),
                                   w, b, g, beta, row_tile=_pick_row_tile(rows))
        qpos = qpos.reshape(B, Qp, C).astype(jnp.bfloat16)

        # memory positional embedding (sine of normalized grid coordinates)
        mem_pos = jnp.pad(get_memory_pos(spatial_shapes), ((0, Lp - L), (0, 0)))
        mem_pos_emb = get_sine_pos_embed(mem_pos, C // 2)     # (Lp, C)

        q = q.astype(jnp.bfloat16)
        outputs_classes, outputs_coords = [], []
        for li, params in enumerate(self.layer_params):
            # TODO(synk): the concrete decoder_layer (deformable sampling with
            # reference_points_input / serialization_strategy / memory update) was not
            # provided; a representative SSM decoder layer is used and `value` passes
            # through unchanged.
            w_kv = params[9]
            kpos_bias = jnp.dot(mem_pos_emb.astype(jnp.bfloat16), w_kv[:, :C],
                                preferred_element_type=jnp.float32).astype(jnp.bfloat16)
            reflog = inverse_sigmoid(refs)
            q, cls_l, coord_l = _run_layer(q, qpos, reflog, mem_bf16, kpos_bias,
                                           kpm_bias, params,
                                           kv_tile=kv_tile, chunk=chunk)
            outputs_classes.append(cls_l[:, :Q])
            outputs_coords.append(coord_l[:, :Q])
            if li == self.num_layers - 1:
                break
            refs = lax.stop_gradient(coord_l)                 # .detach()
        return jnp.stack(outputs_classes), jnp.stack(outputs_coords)


# ----------------------------------------------------------------------------
if __name__ == "__main__":
    key = jax.random.PRNGKey(0)
    B, Q, C, FFN, NH, NL, NC = 2, 16, 128, 256, 4, 2, 8

    # two feature levels: 16x16 and 8x8 -> L = 256 + 64 = 320 memory tokens
    spatial_shapes = [(16, 16), (8, 8)]
    L = sum(h * w for h, w in spatial_shapes)
    level_start_index = jnp.array([0, 256], dtype=jnp.int32)

    kq, kr, kv, kvr, kd = jax.random.split(key, 5)
    query = jax.random.normal(kq, (B, Q, C), jnp.float32)
    reference_points = jax.random.uniform(kr, (B, Q, 4), jnp.float32, 0.05, 0.95)
    value = jax.random.normal(kv, (B, L, C), jnp.float32)
    valid_ratios = jax.random.uniform(kvr, (B, len(spatial_shapes), 2),
                                      jnp.float32, 0.8, 1.0)

    decoder = SsmTransformerDecoderPallas(embed_dim=C, ffn_dim=FFN, num_heads=NH,
                                          num_layers=NL, num_classes=NC, key=kd)
    classes, coords = decoder(query, reference_points, value, spatial_shapes,
                              level_start_index, valid_ratios,
                              key_padding_mask=None)
    classes = jax.block_until_ready(classes)
    coords = jax.block_until_ready(coords)

    assert classes.shape == (NL, B, Q, NC), classes.shape
    assert coords.shape == (NL, B, Q, 4), coords.shape
    assert bool(jnp.all(jnp.isfinite(classes)))
    assert bool(jnp.all(jnp.isfinite(coords)))
    assert bool(jnp.all((coords >= 0.0) & (coords <= 1.0)))
    print("KERNEL_OK")
</pallas_src>

<mosaic_0001>
module attributes {stable_mosaic.version = 11 : i64} {
  func.func @_ref_point_head_kernel(%arg0: i32, %arg1: memref<32x256xbf16, #tpu.memory_space<vmem>>, %arg2: memref<256x128xbf16, #tpu.memory_space<vmem>>, %arg3: memref<1x128xf32, #tpu.memory_space<vmem>>, %arg4: memref<1x128xf32, #tpu.memory_space<vmem>>, %arg5: memref<1x128xf32, #tpu.memory_space<vmem>>, %arg6: memref<32x128xf32, #tpu.memory_space<vmem>>) attributes {dimension_semantics = [#tpu.dimension_semantics<parallel>], iteration_bounds = array<i64: 1>, scalar_prefetch = 0 : i64, scratch_operands = 0 : i64, tpu.core_type = #tpu.core_type<tc>, window_params = [{transform_indices = @transform_0, window_bounds = array<i64: 32, 256>}, {pipeline_mode = #tpu.pipeline_mode<synchronous>, transform_indices = @transform_1, window_bounds = array<i64: 256, 128>}, {pipeline_mode = #tpu.pipeline_mode<synchronous>, transform_indices = @transform_2, window_bounds = array<i64: 1, 128>}, {pipeline_mode = #tpu.pipeline_mode<synchronous>, transform_indices = @transform_3, window_bounds = array<i64: 1, 128>}, {pipeline_mode = #tpu.pipeline_mode<synchronous>, transform_indices = @transform_4, window_bounds = array<i64: 1, 128>}, {transform_indices = @transform_5, window_bounds = array<i64: 32, 128>}]} {
    %c0 = arith.constant 0 : index
    %c0_0 = arith.constant 0 : index
    %0 = vector.load %arg1[%c0, %c0_0] : memref<32x256xbf16, #tpu.memory_space<vmem>>, vector<32x256xbf16>
    %c0_1 = arith.constant 0 : index
    %c0_2 = arith.constant 0 : index
    %1 = vector.load %arg2[%c0_1, %c0_2] : memref<256x128xbf16, #tpu.memory_space<vmem>>, vector<256x128xbf16>
    %cst = arith.constant dense<0.000000e+00> : vector<32x128xf32>
    %2 = tpu.matmul %0, %1, %cst {dimension_numbers = #tpu.dot_dimension_numbers<[1], [0], [0], [1], [0, 0, 1, 1], [], []>} : vector<32x256xbf16>, vector<256x128xbf16>, vector<32x128xf32> -> vector<32x128xf32>
    %c0_3 = arith.constant 0 : index
    %c0_4 = arith.constant 0 : index
    %3 = vector.load %arg3[%c0_3, %c0_4] : memref<1x128xf32, #tpu.memory_space<vmem>>, vector<1x128xf32>
    %4 = vector.broadcast %3 : vector<1x128xf32> to vector<32x128xf32>
    %5 = arith.addf %2, %4 : vector<32x128xf32>
    %c0_5 = arith.constant 0 : index
    %c0_6 = arith.constant 0 : index
    %6 = vector.load %arg4[%c0_5, %c0_6] : memref<1x128xf32, #tpu.memory_space<vmem>>, vector<1x128xf32>
    %c0_7 = arith.constant 0 : index
    %c0_8 = arith.constant 0 : index
    %7 = vector.load %arg5[%c0_7, %c0_8] : memref<1x128xf32, #tpu.memory_space<vmem>>, vector<1x128xf32>
    %cst_9 = arith.constant dense<0.000000e+00> : vector<32xf32>
    %8 = vector.multi_reduction <add>, %5, %cst_9 [1] : vector<32x128xf32> to vector<32xf32>
    %9 = vector.shape_cast %8 : vector<32xf32> to vector<32x1xf32>
    %cst_10 = arith.constant 1.280000e+02 : f32
    %10 = vector.broadcast %cst_10 : f32 to vector<32x1xf32>
    %11 = arith.divf %9, %10 : vector<32x1xf32>
    %12 = vector.broadcast %11 : vector<32x1xf32> to vector<32x128xf32>
    %13 = arith.subf %5, %12 : vector<32x128xf32>
    %14 = vector.broadcast %11 : vector<32x1xf32> to vector<32x128xf32>
    %15 = arith.subf %5, %14 : vector<32x128xf32>
    %16 = arith.mulf %13, %15 : vector<32x128xf32>
    %cst_11 = arith.constant dense<0.000000e+00> : vector<32xf32>
    %17 = vector.multi_reduction <add>, %16, %cst_11 [1] : vector<32x128xf32> to vector<32xf32>
    %18 = vector.shape_cast %17 : vector<32xf32> to vector<32x1xf32>
    %cst_12 = arith.constant 1.280000e+02 : f32
    %19 = vector.broadcast %cst_12 : f32 to vector<32x1xf32>
    %20 = arith.divf %18, %19 : vector<32x1xf32>
    %21 = vector.broadcast %11 : vector<32x1xf32> to vector<32x128xf32>
    %22 = arith.subf %5, %21 : vector<32x128xf32>
    %cst_13 = arith.constant 9.99999974E-6 : f32
    %23 = vector.broadcast %cst_13 : f32 to vector<32x1xf32>
    %24 = arith.addf %20, %23 : vector<32x1xf32>
    %25 = math.rsqrt %24 : vector<32x1xf32>
    %26 = vector.broadcast %25 : vector<32x1xf32> to vector<32x128xf32>
    %27 = arith.mulf %22, %26 : vector<32x128xf32>
    %28 = vector.broadcast %6 : vector<1x128xf32> to vector<32x128xf32>
    %29 = arith.mulf %27, %28 : vector<32x128xf32>
    %30 = vector.broadcast %7 : vector<1x128xf32> to vector<32x128xf32>
    %31 = arith.addf %29, %30 : vector<32x128xf32>
    %c0_14 = arith.constant 0 : index
    %c0_15 = arith.constant 0 : index
    %32 = vector.load %arg6[%c0_14, %c0_15] : memref<32x128xf32, #tpu.memory_space<vmem>>, vector<32x128xf32>
    tpu.vector_store %arg6[%c0_14, %c0_15], %31 {strides = array<i32>} : memref<32x128xf32, #tpu.memory_space<vmem>>, vector<32x128xf32>,
    return
  }
  func.func @transform_0(%arg0: i32) -> (i32, i32) {
    %c0_i32 = arith.constant 0 : i32
    %c0_i32_0 = arith.constant 0 : i32
    return %arg0, %c0_i32 : i32, i32
  }
  func.func @transform_1(%arg0: i32) -> (i32, i32) {
    %c0_i32 = arith.constant 0 : i32
    %c0_i32_0 = arith.constant 0 : i32
    %c0_i32_1 = arith.constant 0 : i32
    return %c0_i32, %c0_i32_0 : i32, i32
  }
  func.func @transform_2(%arg0: i32) -> (i32, i32) {
    %c0_i32 = arith.constant 0 : i32
    %c0_i32_0 = arith.constant 0 : i32
    %c0_i32_1 = arith.constant 0 : i32
    return %c0_i32, %c0_i32_0 : i32, i32
  }
  func.func @transform_3(%arg0: i32) -> (i32, i32) {
    %c0_i32 = arith.constant 0 : i32
    %c0_i32_0 = arith.constant 0 : i32
    %c0_i32_1 = arith.constant 0 : i32
    return %c0_i32, %c0_i32_0 : i32, i32
  }
  func.func @transform_4(%arg0: i32) -> (i32, i32) {
    %c0_i32 = arith.constant 0 : i32
    %c0_i32_0 = arith.constant 0 : i32
    %c0_i32_1 = arith.constant 0 : i32
    return %c0_i32, %c0_i32_0 : i32, i32
  }
  func.func @transform_5(%arg0: i32) -> (i32, i32) {
    %c0_i32 = arith.constant 0 : i32
    %c0_i32_0 = arith.constant 0 : i32
    return %arg0, %c0_i32 : i32, i32
  }
}

</mosaic_0001>

<llo_original>
// kernel: _run_ref_point_head.1
$region0: #{_run_ref_point_head.1}
  #allocation0 [shape = 'u32[]', space=smem, size = 0x4, offset = 0x4, fixed_abs, tag = 'smem constant byte address 0x4 - core index']
  #allocation1 [shape = 'u32[144,128]{1,0:T(1,128)}', space=vmem, size = 0x12000, scoped, tag = 'internal scratch']
  %s0 = inlined_call_operand.hbm [shape: bf16[32,256], index: 0, kind: input, shape index: {}]
  %s1 = inlined_call_operand.hbm [shape: bf16[256,128], index: 1, kind: input, shape index: {}]
  %s2 = inlined_call_operand.vmem [shape: f32[1,128], index: 2, kind: input, shape index: {}]
  %s3 = inlined_call_operand.vmem [shape: f32[1,128], index: 3, kind: input, shape index: {}]
  %s4 = inlined_call_operand.vmem [shape: f32[1,128], index: 4, kind: input, shape index: {}]
  %s5 = inlined_call_operand.hbm [shape: f32[32,128], index: 5, kind: output, shape index: {}]
  %s6 = sld [smem:[#allocation0]]
  $region38: #{_run_ref_point_head.1} parent=0
    _
  %s8 = ssub.s32 1, %s6
  %s9 = scalar_select 0, %s8, %s6
  $region1: #{_run_ref_point_head.1} parent=0
    #allocation2 [shape = 'u8[16384]{0}', space=vmem, size = 0x4000, scoped, tag = 'input window, operand 0, single buffered']
    #allocation3 [shape = 's32[1]{0}', space=sflag, size = 0x4, scoped, tag = 'scoped memory for _run_ref_point_head.1']
    #allocation4 [shape = 's32[1]{0}', space=sflag, size = 0x4, scoped, tag = 'scoped memory for _run_ref_point_head.1']
    #allocation5 [shape = 'u8[65536]{0}', space=vmem, size = 0x10000, scoped, tag = 'input window, operand 1, single buffered']
    #allocation6 [shape = 's32[1]{0}', space=sflag, size = 0x4, scoped, tag = 'scoped memory for _run_ref_point_head.1']
    #allocation7 [shape = 'u8[16384]{0}', space=vmem, size = 0x4000, scoped, tag = 'output window, operand 0, single buffered']
    %10 = vsyncpa [#allocation3], 0
    %11 = vsyncpa [#allocation6], 0
    %12 = vsyncpa [#allocation4], 0
    // Predicated region
    $region2: #{_run_ref_point_head.1} parent=1 // pred_check
      _
    $region3: #{_run_ref_point_head.1} parent=1 // pred_check_branch
      %14 = sbr.rel (0) target = $region5
    $region4: #{_run_ref_point_head.1} parent=1 // pred_region
      %s16 = ssub.s32 512, 512
      %17 = vsyncadd [#allocation3], %s16
      %s18 = sshll.u32 [#allocation2], 4
      %s19 = int_to_ptr.vmem [resolvable:$true] %s18
      %24 = dma.hbm_to_vmem [thread:$0]  %s0, 512, %s19, [#allocation3], 128, 128, 8
    $region5: #{_run_ref_point_head.1} parent=1 // pred_fallthru
      _
    // Predicated region
    $region6: #{_run_ref_point_head.1} parent=1 // pred_check
      _
    $region7: #{_run_ref_point_head.1} parent=1 // pred_check_branch
      %26 = sbr.rel (0) target = $region9
    $region8: #{_run_ref_point_head.1} parent=1 // pred_region
      %s28 = ssub.s32 2048, 2048
      %29 = vsyncadd [#allocation6], %s28
      %s30 = sshll.u32 [#allocation5], 4
      %s31 = int_to_ptr.vmem [resolvable:$true] %s30
      %36 = dma.hbm_to_vmem [thread:$0]  %s1, 2048, %s31, [#allocation6], 64, 64, 4
    $region9: #{_run_ref_point_head.1} parent=1 // pred_fallthru
      _
    // Predicated region
    $region10: #{_run_ref_point_head.1} parent=1 // pred_check
      _
    $region11: #{_run_ref_point_head.1} parent=1 // pred_check_branch
      %38 = sbr.rel (0) target = $region13
    $region12: #{_run_ref_point_head.1} parent=1 // pred_region
      _
    $region13: #{_run_ref_point_head.1} parent=1 // pred_fallthru
      _
    // Predicated region
    $region14: #{_run_ref_point_head.1} parent=1 // pred_check
      _
    $region15: #{_run_ref_point_head.1} parent=1 // pred_check_branch
      %40 = sbr.rel (0) target = $region17
    $region16: #{_run_ref_point_head.1} parent=1 // pred_region
      _
    $region17: #{_run_ref_point_head.1} parent=1 // pred_fallthru
      _
    // Predicated region
    $region18: #{_run_ref_point_head.1} parent=1 // pred_check
      _
    $region19: #{_run_ref_point_head.1} parent=1 // pred_check_branch
      %42 = sbr.rel (0) target = $region21
    $region20: #{_run_ref_point_head.1} parent=1 // pred_region
      _
    $region21: #{_run_ref_point_head.1} parent=1 // pred_fallthru
      _
    // Predicated region
    $region22: #{_run_ref_point_head.1} parent=1 // pred_check
      _
    $region23: #{_run_ref_point_head.1} parent=1 // pred_check_branch
      %44 = sbr.rel (0) target = $region25
    $region24: #{_run_ref_point_head.1} parent=1 // pred_region
      %45 = dma.done [#allocation3], 512
    $region25: #{_run_ref_point_head.1} parent=1 // pred_fallthru
      _
    // Predicated region
    $region26: #{_run_ref_point_head.1} parent=1 // pred_check
      _
    $region27: #{_run_ref_point_head.1} parent=1 // pred_check_branch
      %47 = sbr.rel (0) target = $region29
    $region28: #{_run_ref_point_head.1} parent=1 // pred_region
      %48 = dma.done [#allocation6], 2048
    $region29: #{_run_ref_point_head.1} parent=1 // pred_fallthru
      _
    %v50 = vld [vmem:[#allocation2] sm:$0xff]
    %v51 = vld [vmem:[#allocation2 + $0x8] sm:$0xff]
    %v52 = vld [vmem:[#allocation2 + $0x10] sm:$0xff]
    %v53 = vld [vmem:[#allocation2 + $0x18] sm:$0xff]
    %v54 = vld [vmem:[#allocation5] sm:$0xf]
    %v55 = vld [vmem:[#allocation5 + $0x4] sm:$0xf]
    %v56 = vld [vmem:[#allocation5 + $0x8] sm:$0xf]
    %v57 = vld [vmem:[#allocation5 + $0xc] sm:$0xf]
    %v58 = vld [vmem:[#allocation5 + $0x10] sm:$0xf]
    %v59 = vld [vmem:[#allocation5 + $0x14] sm:$0xf]
    %v60 = vld [vmem:[#allocation5 + $0x18] sm:$0xf]
    %v61 = vld [vmem:[#allocation5 + $0x1c] sm:$0xf]
    %v62 = vld [vmem:[#allocation5 + $0x20] sm:$0xf]
    %v63 = vld [vmem:[#allocation5 + $0x24] sm:$0xf]
    %v64 = vld [vmem:[#allocation5 + $0x28] sm:$0xf]
    %v65 = vld [vmem:[#allocation5 + $0x2c] sm:$0xf]
    %v66 = vld [vmem:[#allocation5 + $0x30] sm:$0xf]
    %v67 = vld [vmem:[#allocation5 + $0x34] sm:$0xf]
    %v68 = vld [vmem:[#allocation5 + $0x38] sm:$0xf]
    %v69 = vld [vmem:[#allocation5 + $0x3c] sm:$0xf]
    %v70 = vld [vmem:[#allocation5 + $0x40] sm:$0xf]
    %v71 = vld [vmem:[#allocation5 + $0x44] sm:$0xf]
    %v72 = vld [vmem:[#allocation5 + $0x48] sm:$0xf]
    %v73 = vld [vmem:[#allocation5 + $0x4c] sm:$0xf]
    %v74 = vld [vmem:[#allocation5 + $0x50] sm:$0xf]
    %v75 = vld [vmem:[#allocation5 + $0x54] sm:$0xf]
    %v76 = vld [vmem:[#allocation5 + $0x58] sm:$0xf]
    %v77 = vld [vmem:[#allocation5 + $0x5c] sm:$0xf]
    %v78 = vld [vmem:[#allocation5 + $0x60] sm:$0xf]
    %v79 = vld [vmem:[#allocation5 + $0x64] sm:$0xf]
    %v80 = vld [vmem:[#allocation5 + $0x68] sm:$0xf]
    %v81 = vld [vmem:[#allocation5 + $0x6c] sm:$0xf]
    %v82 = vld [vmem:[#allocation5 + $0x70] sm:$0xf]
    %v83 = vld [vmem:[#allocation5 + $0x74] sm:$0xf]
    %v84 = vld [vmem:[#allocation5 + $0x78] sm:$0xf]
    %v85 = vld [vmem:[#allocation5 + $0x7c] sm:$0xf]
    %v86 = vld [vmem:[%s2] sm:$0x1]
    %v88 = vlaneseq
    %v89 = vshrl.u32 %v88, 7
    %v90 = vsub.s32 0, %v89
    %v91 = vrot.slane %v86, %v90
    %v97 = vunpack.c.l.b16 %v50
    %v98 = vunpack.c.h.b16 %v50
    %v99 = vunpack.c.l.b16 %v51
    %v100 = vunpack.c.h.b16 %v51
    %v101 = vunpack.c.l.b16 %v52
    %v102 = vunpack.c.h.b16 %v52
    %v103 = vunpack.c.l.b16 %v53
    %v104 = vunpack.c.h.b16 %v53
    %v105 = vpack.c.b16 %v99, %v97
    %v106 = vpack.c.b16 %v100, %v98
    %v107 = vpack.c.b16 %v103, %v101
    %v108 = vpack.c.b16 %v104, %v102
    %v145 = vunpack.c.l.b16 %v54
    %v146 = vunpack.c.l.b16 %v55
    %v147 = vunpack.c.l.b16 %v56
    %v148 = vunpack.c.l.b16 %v57
    %v149 = vunpack.c.l.b16 %v58
    %v150 = vunpack.c.l.b16 %v59
    %v151 = vunpack.c.l.b16 %v60
    %v152 = vunpack.c.l.b16 %v61
    %v153 = vunpack.c.l.b16 %v62
    %v154 = vunpack.c.l.b16 %v63
    %v155 = vunpack.c.l.b16 %v64
    %v156 = vunpack.c.l.b16 %v65
    %v157 = vunpack.c.l.b16 %v66
    %v158 = vunpack.c.l.b16 %v67
    %v159 = vunpack.c.l.b16 %v68
    %v160 = vunpack.c.l.b16 %v69
    %v161 = vunpack.c.l.b16 %v70
    %v162 = vunpack.c.l.b16 %v71
    %v163 = vunpack.c.l.b16 %v72
    %v164 = vunpack.c.l.b16 %v73
    %v165 = vunpack.c.l.b16 %v74
    %v166 = vunpack.c.l.b16 %v75
    %v167 = vunpack.c.l.b16 %v76
    %v168 = vunpack.c.l.b16 %v77
    %v169 = vunpack.c.l.b16 %v78
    %v170 = vunpack.c.l.b16 %v79
    %v171 = vunpack.c.l.b16 %v80
    %v172 = vunpack.c.l.b16 %v81
    %v173 = vunpack.c.l.b16 %v82
    %v174 = vunpack.c.l.b16 %v83
    %v175 = vunpack.c.l.b16 %v84
    %v176 = vunpack.c.l.b16 %v85
    %v177 = vpack.c.b16 %v146, %v145
    %v178 = vpack.c.b16 %v148, %v147
    %v179 = vpack.c.b16 %v150, %v149
    %v180 = vpack.c.b16 %v152, %v151
    %v181 = vpack.c.b16 %v154, %v153
    %v182 = vpack.c.b16 %v156, %v155
    %v183 = vpack.c.b16 %v158, %v157
    %v184 = vpack.c.b16 %v160, %v159
    %v185 = vpack.c.b16 %v162, %v161
    %v186 = vpack.c.b16 %v164, %v163
    %v187 = vpack.c.b16 %v166, %v165
    %v188 = vpack.c.b16 %v168, %v167
    %v189 = vpack.c.b16 %v170, %v169
    %v190 = vpack.c.b16 %v172, %v171
    %v191 = vpack.c.b16 %v174, %v173
    %v192 = vpack.c.b16 %v176, %v175
    %209 = vmatprep.subr.bf16.mxu0 0
    %210 = vmatpush1.bf16.msra.mxu0 %v184
    %211 = vmatprep.subr.bf16.mxu0 0
    %212 = vmatpush1.bf16.msra.mxu0 %v183
    %213 = vmatprep.subr.bf16.mxu0 0
    %214 = vmatpush1.bf16.msra.mxu0 %v182
    %215 = vmatprep.subr.bf16.mxu0 0
    %216 = vmatpush1.bf16.msra.mxu0 %v181
    %217 = vmatprep.subr.bf16.mxu0 0
    %218 = vmatpush1.bf16.msra.mxu0 %v180
    %219 = vmatprep.subr.bf16.mxu0 0
    %220 = vmatpush1.bf16.msra.mxu0 %v179
    %221 = vmatprep.subr.bf16.mxu0 0
    %222 = vmatpush1.bf16.msra.mxu0 %v178
    %223 = vmatprep.subr.bf16.mxu0 0
    %224 = vmatpush1.bf16.msra.mxu0 %v177
    %225 = vmatprep.subr.bf16.mxu0 0
    %226 = vmatpush2.bf16.msra.mxu0 %v192
    %227 = vmatprep.subr.bf16.mxu0 0
    %228 = vmatpush2.bf16.msra.mxu0 %v191
    %229 = vmatprep.subr.bf16.mxu0 0
    %230 = vmatpush2.bf16.msra.mxu0 %v190
    %231 = vmatprep.subr.bf16.mxu0 0
    %232 = vmatpush2.bf16.msra.mxu0 %v189
    %233 = vmatprep.subr.bf16.mxu0 0
    %234 = vmatpush2.bf16.msra.mxu0 %v188
    %235 = vmatprep.subr.bf16.mxu0 0
    %236 = vmatpush2.bf16.msra.mxu0 %v187
    %237 = vmatprep.subr.bf16.mxu0 0
    %238 = vmatpush2.bf16.msra.mxu0 %v186
    %239 = vmatprep.subr.bf16.mxu0 0
    %240 = vmatpush2.bf16.msra.mxu0 %v185
    %241 = vmatprep.mubr.bf16.mxu0 %v106
    %242 = vmatmul.mubr.bf16.gmra.mxu0 %v105
    %v243 = vpop.f32.mrf.mxu0
    %v244 = vadd.f32 %v91, %v243
    %v245 = vpop.f32.mrf.mxu0
    %v246 = vpop.f32.mrf.mxu0
    %v247 = vadd.f32 %v91, %v246
    %v248 = vpop.f32.mrf.mxu0
    %249 = vmatprep.mubr.bf16.mxu0 %v108
    %250 = vmatmul.mubr.bf16.gmra.mxu0 %v107
    %v251 = vpop.f32.mrf.mxu0
    %v252 = vadd.f32 %v91, %v251
    %v253 = vpop.f32.mrf.mxu0
    %v254 = vpop.f32.mrf.mxu0
    %v255 = vadd.f32 %v91, %v254
    %v256 = vpop.f32.mrf.mxu0
    %257 = vdwg.mxu0
    %v258 = vld [vmem:[%s3] sm:$0x1]
    %v259 = vld [vmem:[%s4] sm:$0x1]
    %260 = vadd.xlane.f32.xlu0 %v244
    %v261 = vpop.xlane.xlu0 %260
    %262 = vadd.xlane.f32.xlu0 %v247
    %v263 = vpop.xlane.xlu0 %262
    %264 = vadd.xlane.f32.xlu0 %v252
    %v265 = vpop.xlane.xlu0 %264
    %266 = vadd.xlane.f32.xlu0 %v255
    %v267 = vpop.xlane.xlu0 %266
    %v268 = vrcp.pop 128.0
    %v269 = vmul.f32 %v261, %v268
    %v270 = vmul.f32 %v263, %v268
    %v271 = vmul.f32 %v265, %v268
    %v272 = vmul.f32 %v267, %v268
    %v273 = vsub.f32 %v244, %v269
    %v274 = vsub.f32 %v247, %v270
    %v275 = vsub.f32 %v252, %v271
    %v276 = vsub.f32 %v255, %v272
    %v277 = vmul.f32 %v273, %v273
    %v278 = vmul.f32 %v274, %v274
    %v279 = vmul.f32 %v275, %v275
    %v280 = vmul.f32 %v276, %v276
    %281 = vadd.xlane.f32.xlu0 %v277
    %v282 = vpop.xlane.xlu0 %281
    %283 = vadd.xlane.f32.xlu0 %v278
    %v284 = vpop.xlane.xlu0 %283
    %285 = vadd.xlane.f32.xlu0 %v279
    %v286 = vpop.xlane.xlu0 %285
    %287 = vadd.xlane.f32.xlu0 %v280
    %v288 = vpop.xlane.xlu0 %287
    %v289 = vmul.f32 %v282, %v268
    %v290 = vmul.f32 %v284, %v268
    %v291 = vmul.f32 %v286, %v268
    %v292 = vmul.f32 %v288, %v268
    %v293 = vadd.f32 %v289, 1e-05
    %v294 = vadd.f32 %v290, 1e-05
    %v295 = vadd.f32 %v291, 1e-05
    %v296 = vadd.f32 %v292, 1e-05
    %v297 = vrsqrt.pop %v293
    %v298 = vrsqrt.pop %v294
    %v299 = vrsqrt.pop %v295
    %v300 = vrsqrt.pop %v296
    %v301 = vmul.f32 %v273, %v297
    %v302 = vmul.f32 %v274, %v298
    %v303 = vmul.f32 %v275, %v299
    %v304 = vmul.f32 %v276, %v300
    %v306 = vlaneseq
    %v307 = vshrl.u32 %v306, 7
    %v308 = vsub.s32 0, %v307
    %v309 = vrot.slane %v258, %v308
    %v311 = vmul.f32 %v301, %v309
    %v312 = vmul.f32 %v302, %v309
    %v313 = vmul.f32 %v303, %v309
    %v314 = vmul.f32 %v304, %v309
    %v316 = vlaneseq
    %v317 = vshrl.u32 %v316, 7
    %v318 = vsub.s32 0, %v317
    %v319 = vrot.slane %v259, %v318
    %v321 = vadd.f32 %v311, %v319
    %v322 = vadd.f32 %v312, %v319
    %v323 = vadd.f32 %v313, %v319
    %v324 = vadd.f32 %v314, %v319
    %325 = vst [vmem:[#allocation7] sm:$0xff] %v321
    %326 = vst [vmem:[#allocation7 + $0x8] sm:$0xff] %v322
    %327 = vst [vmem:[#allocation7 + $0x10] sm:$0xff] %v323
    %328 = vst [vmem:[#allocation7 + $0x18] sm:$0xff] %v324
    // Predicated region
    $region30: #{_run_ref_point_head.1} parent=1 // pred_check
      _
    $region31: #{_run_ref_point_head.1} parent=1 // pred_check_branch
      %330 = sbr.rel (0) target = $region33
    $region32: #{_run_ref_point_head.1} parent=1 // pred_region
      %s332 = ssub.s32 512, 512
      %333 = vsyncadd [#allocation4], %s332
      %s334 = sshll.u32 [#allocation7], 4
      %s335 = int_to_ptr.vmem [resolvable:$true] %s334
      %340 = dma.vmem_to_hbm [thread:$0]  %s335, 512, %s5, [#allocation4], 128, 128, 8
    $region33: #{_run_ref_point_head.1} parent=1 // pred_fallthru
      _
    // Predicated region
    $region34: #{_run_ref_point_head.1} parent=1 // pred_check
      _
    $region35: #{_run_ref_point_head.1} parent=1 // pred_check_branch
      %342 = sbr.rel (0) target = $region37
    $region36: #{_run_ref_point_head.1} parent=1 // pred_region
      %343 = dma.done [#allocation4], 512
    $region37: #{_run_ref_point_head.1} parent=1 // pred_fallthru
      _
    %344 = vsyncpa [#allocation3], 1
    %345 = vsyncpa [#allocation6], 1
    %346 = vsyncpa [#allocation4], 1

</llo_original>
